<compile_context>
chip_gen: v5e
topology: v5e:2x2
jax: 0.10.0
libtpu: 0.0.40
codegen_flags: <defaults>
</compile_context>

<pallas_src>
import jax
import jax.numpy as jnp
from jax.experimental import pallas as pl
from jax.experimental.pallas import tpu as pltpu


def _round_up(x, m):
    return ((x + m - 1) // m) * m


def sigm_kernel(x_ref, w_ref, b_ref, o_ref):
    # In-kernel bf16 cast (VPU, hidden under DMA); MXU matmul with f32 accumulate.
    x_bf = x_ref[...].astype(jnp.bfloat16)
    logits = jnp.dot(x_bf, w_ref[...], preferred_element_type=jnp.float32)
    logits = logits + b_ref[...]                      # (TB, Cp) + (1, Cp), f32
    # Numerically-stable softmax over the class axis (dim=1).
    m = jnp.max(logits, axis=-1, keepdims=True)
    e = jnp.exp(logits - m)
    denom = jnp.sum(e, axis=-1, keepdims=True)
    # Exact divide (not approx reciprocal): kernel is memory-bound so this is
    # free, and it guarantees rows sum to 1 within f32 rounding.
    o_ref[...] = (e / denom).astype(o_ref.dtype)


def sigm_forward(x, w, b, *, block_b=2048):
    """x: (B, 768) f32, w: (768, C) f32, b: (C,) f32 -> (B, C) f32 softmax probs."""
    B, D = x.shape
    C = w.shape[1]

    # --- Lane-dense class dimension: pad C up to a multiple of 128. -----------
    C_pad = max(128, _round_up(C, 128))
    if C_pad != C:
        w = jnp.pad(w, ((0, 0), (0, C_pad - C)))
        # Large negative bias -> padded logits vanish under softmax (kept
        # finite so max/exp arithmetic never produces NaN).
        b = jnp.pad(b, (0, C_pad - C), constant_values=-1e30)

    # Weights/bias are tiny: pre-cast once; they stay VMEM-resident.
    w_bf = w.astype(jnp.bfloat16)
    b2 = b.reshape(1, C_pad).astype(jnp.float32)

    # --- Batch tiling: aim for >= ~8 grid steps, cap tile at block_b rows, ----
    # --- never exceed (rounded-up) B.  No padding of x: partial last block. ---
    target = _round_up(pl.cdiv(B, 8), 8)          # ~B/8 rows per tile
    TB = max(8, min(block_b, max(256, target)))
    TB = min(TB, _round_up(B, 8))
    num_tiles = pl.cdiv(B, TB)

    cost = pl.CostEstimate(
        flops=2 * B * D * C_pad,
        transcendentals=B * C_pad,
        bytes_accessed=(x.size * 4 + w_bf.size * 2 + b2.size * 4 + B * C_pad * 4),
    )

    out = pl.pallas_call(
        sigm_kernel,
        out_shape=jax.ShapeDtypeStruct((B, C_pad), jnp.float32),
        grid_spec=pl.GridSpec(
            grid=(num_tiles,),
            in_specs=[
                pl.BlockSpec((TB, D), lambda i: (i, 0)),        # streamed f32 x tile
                pl.BlockSpec((D, C_pad), lambda i: (0, 0)),     # resident weights (bf16)
                pl.BlockSpec((1, C_pad), lambda i: (0, 0)),     # resident bias (f32)
            ],
            out_specs=pl.BlockSpec((TB, C_pad), lambda i: (i, 0)),
        ),
        compiler_params=pltpu.CompilerParams(
            dimension_semantics=("parallel",),          # megacore sharding on v7x
            vmem_limit_bytes=32 * 1024 * 1024,          # TB<=2048 f32 tiles fit easily
        ),
        cost_estimate=cost,
    )(x, w_bf, b2)

    # Strip padded classes (batch is not padded anymore).
    return out[:, :C]


if __name__ == "__main__":
    key = jax.random.PRNGKey(0)
    kx, kw, kb = jax.random.split(key, 3)

    B = 16              # small batch
    D = 768             # fixed by the module: nn.Linear(768, num_classes)
    num_classes = 10

    # Deterministic parameter init (PyTorch Linear default: U(-1/sqrt(D), 1/sqrt(D))).
    bound = 1.0 / (D ** 0.5)
    w = jax.random.uniform(kw, (D, num_classes), jnp.float32, -bound, bound)
    b = jax.random.uniform(kb, (num_classes,), jnp.float32, -bound, bound)

    x = jax.random.normal(kx, (B, D), jnp.float32)

    # block_b=8 forces a 2-tile batch grid even at this tiny test size.
    out = sigm_forward(x, w, b, block_b=8)
    out = jax.block_until_ready(out)

    # Sanity check against pure-JAX f32 reference (bf16 MXU inputs -> loose tol).
    ref = jax.nn.softmax(x @ w + b, axis=1)
    assert out.shape == (B, num_classes)
    assert jnp.allclose(out, ref, atol=1e-2, rtol=1e-2)
    assert jnp.allclose(jnp.sum(out, axis=1), 1.0, atol=1e-3)

    print("KERNEL_OK")
</pallas_src>

<mosaic_0001>
module attributes {stable_mosaic.version = 11 : i64} {
  func.func @sigm_kernel(%arg0: i32, %arg1: memref<8x768xf32, #tpu.memory_space<vmem>>, %arg2: memref<768x128xbf16, #tpu.memory_space<vmem>>, %arg3: memref<1x128xf32, #tpu.memory_space<vmem>>, %arg4: memref<8x128xf32, #tpu.memory_space<vmem>>) attributes {dimension_semantics = [#tpu.dimension_semantics<parallel>], iteration_bounds = array<i64: 2>, scalar_prefetch = 0 : i64, scratch_operands = 0 : i64, tpu.core_type = #tpu.core_type<tc>, window_params = [{transform_indices = @transform_0, window_bounds = array<i64: 8, 768>}, {pipeline_mode = #tpu.pipeline_mode<synchronous>, transform_indices = @transform_1, window_bounds = array<i64: 768, 128>}, {pipeline_mode = #tpu.pipeline_mode<synchronous>, transform_indices = @transform_2, window_bounds = array<i64: 1, 128>}, {transform_indices = @transform_3, window_bounds = array<i64: 8, 128>}]} {
    %c0 = arith.constant 0 : index
    %c0_0 = arith.constant 0 : index
    %0 = vector.load %arg1[%c0, %c0_0] : memref<8x768xf32, #tpu.memory_space<vmem>>, vector<8x768xf32>
    %1 = arith.truncf %0 : vector<8x768xf32> to vector<8x768xbf16>
    %c0_1 = arith.constant 0 : index
    %c0_2 = arith.constant 0 : index
    %2 = vector.load %arg2[%c0_1, %c0_2] : memref<768x128xbf16, #tpu.memory_space<vmem>>, vector<768x128xbf16>
    %cst = arith.constant dense<0.000000e+00> : vector<8x128xf32>
    %3 = tpu.matmul %1, %2, %cst {dimension_numbers = #tpu.dot_dimension_numbers<[1], [0], [0], [1], [0, 0, 1, 1], [], []>} : vector<8x768xbf16>, vector<768x128xbf16>, vector<8x128xf32> -> vector<8x128xf32>
    %c0_3 = arith.constant 0 : index
    %c0_4 = arith.constant 0 : index
    %4 = vector.load %arg3[%c0_3, %c0_4] : memref<1x128xf32, #tpu.memory_space<vmem>>, vector<1x128xf32>
    %5 = vector.broadcast %4 : vector<1x128xf32> to vector<8x128xf32>
    %6 = arith.addf %3, %5 : vector<8x128xf32>
    %cst_5 = arith.constant dense<0xFF800000> : vector<8xf32>
    %7 = vector.multi_reduction <maximumf>, %6, %cst_5 [1] : vector<8x128xf32> to vector<8xf32>
    %8 = vector.shape_cast %7 : vector<8xf32> to vector<8x1xf32>
    %9 = vector.broadcast %8 : vector<8x1xf32> to vector<8x128xf32>
    %10 = arith.subf %6, %9 : vector<8x128xf32>
    %11 = math.exp %10 : vector<8x128xf32>
    %cst_6 = arith.constant dense<0.000000e+00> : vector<8xf32>
    %12 = vector.multi_reduction <add>, %11, %cst_6 [1] : vector<8x128xf32> to vector<8xf32>
    %13 = vector.shape_cast %12 : vector<8xf32> to vector<8x1xf32>
    %14 = vector.broadcast %13 : vector<8x1xf32> to vector<8x128xf32>
    %15 = arith.divf %11, %14 : vector<8x128xf32>
    %c0_7 = arith.constant 0 : index
    %c0_8 = arith.constant 0 : index
    %16 = vector.load %arg4[%c0_7, %c0_8] : memref<8x128xf32, #tpu.memory_space<vmem>>, vector<8x128xf32>
    tpu.vector_store %arg4[%c0_7, %c0_8], %15 {strides = array<i32>} : memref<8x128xf32, #tpu.memory_space<vmem>>, vector<8x128xf32>,
    return
  }
  func.func @transform_0(%arg0: i32) -> (i32, i32) {
    %c0_i32 = arith.constant 0 : i32
    %c0_i32_0 = arith.constant 0 : i32
    return %arg0, %c0_i32 : i32, i32
  }
  func.func @transform_1(%arg0: i32) -> (i32, i32) {
    %c0_i32 = arith.constant 0 : i32
    %c0_i32_0 = arith.constant 0 : i32
    %c0_i32_1 = arith.constant 0 : i32
    return %c0_i32, %c0_i32_0 : i32, i32
  }
  func.func @transform_2(%arg0: i32) -> (i32, i32) {
    %c0_i32 = arith.constant 0 : i32
    %c0_i32_0 = arith.constant 0 : i32
    %c0_i32_1 = arith.constant 0 : i32
    return %c0_i32, %c0_i32_0 : i32, i32
  }
  func.func @transform_3(%arg0: i32) -> (i32, i32) {
    %c0_i32 = arith.constant 0 : i32
    %c0_i32_0 = arith.constant 0 : i32
    return %arg0, %c0_i32 : i32, i32
  }
}

</mosaic_0001>

<llo_original>
// kernel: tpu_custom_call.1
$region0: #{tpu_custom_call.1}
  #allocation0 [shape = 'u32[]', space=smem, size = 0x4, offset = 0x4, fixed_abs, tag = 'smem constant byte address 0x4 - core index']
  #allocation1 [shape = 'u32[72,128]{1,0:T(1,128)}', space=vmem, size = 0x9000, scoped, tag = 'internal scratch']
  %s0 = inlined_call_operand.hbm [shape: f32[16,768], index: 0, kind: input, shape index: {}]
  %s1 = inlined_call_operand.hbm [shape: bf16[768,128], index: 1, kind: input, shape index: {}]
  %s2 = inlined_call_operand.vmem [shape: f32[1,128], index: 2, kind: input, shape index: {}]
  %s3 = inlined_call_operand.hbm [shape: f32[16,128], index: 3, kind: output, shape index: {}]
  %s4 = sld [smem:[#allocation0]]
  $region53: #{tpu_custom_call.1} parent=0
    _
  %s6 = ssub.s32 1, %s4
  %s7 = scalar_select 0, %s6, %s4
  $region1: #{tpu_custom_call.1} parent=0
    #allocation2 [shape = 'u8[49152]{0}', space=vmem, size = 0xc000, scoped, tag = 'input window, operand 0']
    #allocation3 [shape = 's32[2]{0}', space=sflag, size = 0x8, scoped, tag = 'scoped memory for tpu_custom_call.1']
    #allocation4 [shape = 's32[2]{0}', space=sflag, size = 0x8, scoped, tag = 'scoped memory for tpu_custom_call.1']
    #allocation5 [shape = 'u8[196608]{0}', space=vmem, size = 0x30000, scoped, tag = 'input window, operand 1, single buffered']
    #allocation6 [shape = 's32[1]{0}', space=sflag, size = 0x4, scoped, tag = 'scoped memory for tpu_custom_call.1']
    #allocation7 [shape = 'u8[8192]{0}', space=vmem, size = 0x2000, scoped, tag = 'output window, operand 0']
    %8 = vsyncpa [#allocation3], 0
    %s9 = scalar_lea.sflag [#allocation3], 1
    %10 = vsyncpa %s9, 0
    %11 = vsyncpa [#allocation6], 0
    %12 = vsyncpa [#allocation4], 0
    %s13 = scalar_lea.sflag [#allocation4], 1
    %14 = vsyncpa %s13, 0
    loop: start=0, step=1, limit=4
    $region2: #{tpu_custom_call.1} parent=1 // loop_pre_header
      _
    $region3: #{tpu_custom_call.1} parent=1 // loop_header
      %s16 = sphi 0, %s20
      %p17 = scmp.ge.s32.totalorder %s16, 4
      %s26 = sphi 0, %s28
      %s29 = sphi 0, %s26
      %s30 = sphi 0, %s29
      %s46 = sphi 0, %s30
      %s50 = sphi 0, %s50
      %s52 = sphi 0, %s50
      %s53 = sphi 0, %s52
      %s67 = sphi 0, %s53
      %s71 = sphi 0, %s71
      %s73 = sphi 0, %s71
      %s74 = sphi 0, %s73
      %s88 = sphi 0, %s74
      %s94 = sphi 0, %s96
      %s97 = sphi 0, %s94
      %s98 = sphi 0, %s97
      %s114 = sphi 0, %s98
    $region4: #{tpu_custom_call.1} parent=1 // loop_header_branch
      %19 = sbr.rel (%p17) target = $region8
    $region5: #{tpu_custom_call.1} parent=1 // loop_body
      %s21 = ssub.s32 %s16, 1
      %s22 = ssub.s32 %s16, 2
      %s23 = sadd.s32 %s16, 1
      %s24 = ssub.s32 %s16, %s23
      %p25 = scmp.eq.s32.totalorder %s24, 0
      %s27 = sadd.s32 %s26, 1
      %s28 = scalar_select %p25, %s26, %s27
      %p31 = pneg %p25
      %p32 = scmp.eq.s32.totalorder %s16, 1
      %p33 = por %p31, %p32
      %p34 = scmp.ne.s32.totalorder %s26, %s29
      %p35 = scmp.eq.s32.totalorder %s16, 0
      %p36 = por %p34, %p35
      %p37 = scmp.ne.s32.totalorder %s26, %s29
      %p38 = scmp.eq.s32.totalorder %s21, 1
      %p39 = por %p37, %p38
      %p40 = scmp.ne.s32.totalorder %s29, %s30
      %p41 = scmp.eq.s32.totalorder %s21, 0
      %p42 = por %p40, %p41
      %p43 = scmp.ne.s32.totalorder %s29, %s30
      %p44 = scmp.eq.s32.totalorder %s22, 1
      %p45 = por %p43, %p44
      %p47 = scmp.ne.s32.totalorder %s30, %s46
      %p48 = scmp.eq.s32.totalorder %s22, 0
      %p49 = por %p47, %p48
      %s51 = sadd.s32 %s50, 1
      %p54 = scmp.eq.s32.totalorder %s16, 1
      %p55 = scmp.ne.s32.totalorder %s50, %s52
      %p56 = scmp.eq.s32.totalorder %s16, 0
      %p57 = por %p55, %p56
      %p58 = scmp.ne.s32.totalorder %s50, %s52
      %p59 = scmp.eq.s32.totalorder %s21, 1
      %p60 = por %p58, %p59
      %p61 = scmp.ne.s32.totalorder %s52, %s53
      %p62 = scmp.eq.s32.totalorder %s21, 0
      %p63 = por %p61, %p62
      %p64 = scmp.ne.s32.totalorder %s52, %s53
      %p65 = scmp.eq.s32.totalorder %s22, 1
      %p66 = por %p64, %p65
      %p68 = scmp.ne.s32.totalorder %s53, %s67
      %p69 = scmp.eq.s32.totalorder %s22, 0
      %p70 = por %p68, %p69
      %s72 = sadd.s32 %s71, 1
      %p75 = scmp.eq.s32.totalorder %s16, 1
      %p76 = scmp.ne.s32.totalorder %s71, %s73
      %p77 = scmp.eq.s32.totalorder %s16, 0
      %p78 = por %p76, %p77
      %p79 = scmp.ne.s32.totalorder %s71, %s73
      %p80 = scmp.eq.s32.totalorder %s21, 1
      %p81 = por %p79, %p80
      %p82 = scmp.ne.s32.totalorder %s73, %s74
      %p83 = scmp.eq.s32.totalorder %s21, 0
      %p84 = por %p82, %p83
      %p85 = scmp.ne.s32.totalorder %s73, %s74
      %p86 = scmp.eq.s32.totalorder %s22, 1
      %p87 = por %p85, %p86
      %p89 = scmp.ne.s32.totalorder %s74, %s88
      %p90 = scmp.eq.s32.totalorder %s22, 0
      %p91 = por %p89, %p90
      %s92 = ssub.s32 %s16, %s23
      %p93 = scmp.eq.s32.totalorder %s92, 0
      %s95 = sadd.s32 %s94, 1
      %s96 = scalar_select %p93, %s94, %s95
      %p99 = pneg %p93
      %p100 = scmp.eq.s32.totalorder %s16, 1
      %p101 = por %p99, %p100
      %p102 = scmp.ne.s32.totalorder %s94, %s97
      %p103 = scmp.eq.s32.totalorder %s16, 0
      %p104 = por %p102, %p103
      %p105 = scmp.ne.s32.totalorder %s94, %s97
      %p106 = scmp.eq.s32.totalorder %s21, 1
      %p107 = por %p105, %p106
      %p108 = scmp.ne.s32.totalorder %s97, %s98
      %p109 = scmp.eq.s32.totalorder %s21, 0
      %p110 = por %p108, %p109
      %p111 = scmp.ne.s32.totalorder %s97, %s98
      %p112 = scmp.eq.s32.totalorder %s22, 1
      %p113 = por %p111, %p112
      %p115 = scmp.ne.s32.totalorder %s98, %s114
      %p116 = scmp.eq.s32.totalorder %s22, 0
      %p117 = por %p115, %p116
      %p118 = scmp.le.s32.totalorder 1, %s16
      %p119 = scmp.lt.s32.totalorder %s16, 3
      %p120 = pnand %p118, %p119
      %p121 = pneg %p120
      // Predicated region
      $region9: #{tpu_custom_call.1} parent=5 // pred_check
        _
      $region10: #{tpu_custom_call.1} parent=5 // pred_check_branch
        %123 = sbr.rel (%p120) target = $region12
      $region11: #{tpu_custom_call.1} parent=5 // pred_region
        %s124 = ssub.s32 %s16, 1
        // Predicated region
        $region13: #{tpu_custom_call.1} parent=11 // pred_check
          %p125 = pneg %p63
        $region14: #{tpu_custom_call.1} parent=11 // pred_check_branch
          %127 = sbr.rel (%p125) target = $region16
        $region15: #{tpu_custom_call.1} parent=11 // pred_region
          %129 = vsyncadd [#allocation6], 0
          %s130 = sshll.u32 %s1, 4
          %s131 = int_to_ptr.hbm [resolvable:$true] %s130
          %s132 = sshll.u32 [#allocation5], 4
          %s133 = int_to_ptr.vmem [resolvable:$true] %s132
          %138 = dma.hbm_to_vmem [thread:$0]  %s131, 6144, %s133, [#allocation6], 64, 64, 4
        $region16: #{tpu_custom_call.1} parent=11 // pred_fallthru
          _
        // Predicated region
        $region17: #{tpu_custom_call.1} parent=11 // pred_check
          %p139 = pneg %p84
        $region18: #{tpu_custom_call.1} parent=11 // pred_check_branch
          %141 = sbr.rel (%p139) target = $region20
        $region19: #{tpu_custom_call.1} parent=11 // pred_region
          _
        $region20: #{tpu_custom_call.1} parent=11 // pred_fallthru
          _
      $region12: #{tpu_custom_call.1} parent=5 // pred_fallthru
        _
      %p142 = scmp.lt.s32.totalorder %s16, 2
      // Predicated region
      $region21: #{tpu_custom_call.1} parent=5 // pred_check
        %p143 = pneg %p142
      $region22: #{tpu_custom_call.1} parent=5 // pred_check_branch
        %145 = sbr.rel (%p143) target = $region24
      $region23: #{tpu_custom_call.1} parent=5 // pred_region
        // Predicated region
        $region25: #{tpu_custom_call.1} parent=23 // pred_check
          %p146 = pneg %p36
        $region26: #{tpu_custom_call.1} parent=23 // pred_check_branch
          %148 = sbr.rel (%p146) target = $region28
        $region27: #{tpu_custom_call.1} parent=23 // pred_region
          %s149 = sand.u32 %s26, 1
          %s150 = scalar_lea.sflag [#allocation3], %s149
          %s151 = sand.u32 %s26, 1
          %s152 = smul.addr %s151, 48
          %s153 = scalar_lea.vmem [#allocation2], %s152
          %155 = vsyncadd %s150, 0
          %s156 = smul.addr %s16, 6
          %s157 = smul.addr %s156, 8
          %s158 = scalar_lea.hbm %s0, %s157
          %s160 = sshll.u32 %s158, 4
          %s161 = int_to_ptr.hbm [resolvable:$true] %s160
          %s162 = sshll.u32 %s153, 4
          %s163 = int_to_ptr.vmem [resolvable:$true] %s162
          %165 = dma.hbm_to_vmem [thread:$0]  %s161, 768, %s163, %s150
        $region28: #{tpu_custom_call.1} parent=23 // pred_fallthru
          _
      $region24: #{tpu_custom_call.1} parent=5 // pred_fallthru
        _
      %p166 = scmp.le.s32.totalorder 1, %s16
      %p167 = scmp.lt.s32.totalorder %s16, 3
      %p168 = pnand %p166, %p167
      %p169 = pneg %p168
      // Predicated region
      $region29: #{tpu_custom_call.1} parent=5 // pred_check
        _
      $region30: #{tpu_custom_call.1} parent=5 // pred_check_branch
        %171 = sbr.rel (%p168) target = $region32
      $region31: #{tpu_custom_call.1} parent=5 // pred_region
        %s172 = ssub.s32 %s16, 1
        %s173 = sand.u32 %s29, 1
        %s174 = scalar_lea.sflag [#allocation3], %s173
        %s175 = sand.u32 %s29, 1
        %s176 = smul.addr %s175, 48
        %s177 = scalar_lea.vmem [#allocation2], %s176
        // Predicated region
        $region33: #{tpu_custom_call.1} parent=31 // pred_check
          %p178 = pneg %p42
        $region34: #{tpu_custom_call.1} parent=31 // pred_check_branch
          %180 = sbr.rel (%p178) target = $region36
        $region35: #{tpu_custom_call.1} parent=31 // pred_region
          %182 = dma.done %s174, 768
        $region36: #{tpu_custom_call.1} parent=31 // pred_fallthru
          _
        // Predicated region
        $region37: #{tpu_custom_call.1} parent=31 // pred_check
          %p183 = pneg %p63
        $region38: #{tpu_custom_call.1} parent=31 // pred_check_branch
          %185 = sbr.rel (%p183) target = $region40
        $region39: #{tpu_custom_call.1} parent=31 // pred_region
          %187 = dma.done [#allocation6], 6144
        $region40: #{tpu_custom_call.1} parent=31 // pred_fallthru
          _
        %s188 = sand.u32 %s29, 1
        %s189 = scalar_lea.sflag [#allocation3], %s188
        %s190 = sand.u32 %s29, 1
        %s191 = smul.addr %s190, 48
        %s192 = scalar_lea.vmem [#allocation2], %s191
        %p193 = pneg %p42
        %p194 = pneg %p39
        %p195 = pneg %p63
        %p196 = pneg %p60
        %p197 = pneg %p84
        %p198 = pneg %p81
        %p199 = pneg %p110
        %p200 = pneg %p107
        %s201 = sand.u32 %s97, 1
        %s202 = scalar_lea.sflag [#allocation4], %s201
        %s203 = sand.u32 %s97, 1
        %s204 = smul.addr %s203, 8
        %s205 = scalar_lea.vmem [#allocation7], %s204
        %v206 = vld [vmem:[%s177] sm:$0xff]
        %v207 = vld [vmem:[%s177 + $0x8] sm:$0xff]
        %v208 = vld [vmem:[%s177 + $0x10] sm:$0xff]
        %v209 = vld [vmem:[%s177 + $0x18] sm:$0xff]
        %v210 = vld [vmem:[%s177 + $0x20] sm:$0xff]
        %v211 = vld [vmem:[%s177 + $0x28] sm:$0xff]
        %v212 = vpack.c.bf16 %v206, %v206
        %v213 = vpack.c.bf16 %v207, %v207
        %v214 = vpack.c.bf16 %v208, %v208
        %v215 = vpack.c.bf16 %v209, %v209
        %v216 = vpack.c.bf16 %v210, %v210
        %v217 = vpack.c.bf16 %v211, %v211
        %v218 = vld [vmem:[#allocation5] sm:$0xf]
        %v219 = vld [vmem:[#allocation5 + $0x4] sm:$0xf]
        %v220 = vld [vmem:[#allocation5 + $0x8] sm:$0xf]
        %v221 = vld [vmem:[#allocation5 + $0xc] sm:$0xf]
        %v222 = vld [vmem:[#allocation5 + $0x10] sm:$0xf]
        %v223 = vld [vmem:[#allocation5 + $0x14] sm:$0xf]
        %v224 = vld [vmem:[#allocation5 + $0x18] sm:$0xf]
        %v225 = vld [vmem:[#allocation5 + $0x1c] sm:$0xf]
        %v226 = vld [vmem:[#allocation5 + $0x20] sm:$0xf]
        %v227 = vld [vmem:[#allocation5 + $0x24] sm:$0xf]
        %v228 = vld [vmem:[#allocation5 + $0x28] sm:$0xf]
        %v229 = vld [vmem:[#allocation5 + $0x2c] sm:$0xf]
        %v230 = vld [vmem:[#allocation5 + $0x30] sm:$0xf]
        %v231 = vld [vmem:[#allocation5 + $0x34] sm:$0xf]
        %v232 = vld [vmem:[#allocation5 + $0x38] sm:$0xf]
        %v233 = vld [vmem:[#allocation5 + $0x3c] sm:$0xf]
        %v234 = vld [vmem:[#allocation5 + $0x40] sm:$0xf]
        %v235 = vld [vmem:[#allocation5 + $0x44] sm:$0xf]
        %v236 = vld [vmem:[#allocation5 + $0x48] sm:$0xf]
        %v237 = vld [vmem:[#allocation5 + $0x4c] sm:$0xf]
        %v238 = vld [vmem:[#allocation5 + $0x50] sm:$0xf]
        %v239 = vld [vmem:[#allocation5 + $0x54] sm:$0xf]
        %v240 = vld [vmem:[#allocation5 + $0x58] sm:$0xf]
        %v241 = vld [vmem:[#allocation5 + $0x5c] sm:$0xf]
        %v242 = vld [vmem:[#allocation5 + $0x60] sm:$0xf]
        %v243 = vld [vmem:[#allocation5 + $0x64] sm:$0xf]
        %v244 = vld [vmem:[#allocation5 + $0x68] sm:$0xf]
        %v245 = vld [vmem:[#allocation5 + $0x6c] sm:$0xf]
        %v246 = vld [vmem:[#allocation5 + $0x70] sm:$0xf]
        %v247 = vld [vmem:[#allocation5 + $0x74] sm:$0xf]
        %v248 = vld [vmem:[#allocation5 + $0x78] sm:$0xf]
        %v249 = vld [vmem:[#allocation5 + $0x7c] sm:$0xf]
        %v250 = vld [vmem:[#allocation5 + $0x80] sm:$0xf]
        %v251 = vld [vmem:[#allocation5 + $0x84] sm:$0xf]
        %v252 = vld [vmem:[#allocation5 + $0x88] sm:$0xf]
        %v253 = vld [vmem:[#allocation5 + $0x8c] sm:$0xf]
        %v254 = vld [vmem:[#allocation5 + $0x90] sm:$0xf]
        %v255 = vld [vmem:[#allocation5 + $0x94] sm:$0xf]
        %v256 = vld [vmem:[#allocation5 + $0x98] sm:$0xf]
        %v257 = vld [vmem:[#allocation5 + $0x9c] sm:$0xf]
        %v258 = vld [vmem:[#allocation5 + $0xa0] sm:$0xf]
        %v259 = vld [vmem:[#allocation5 + $0xa4] sm:$0xf]
        %v260 = vld [vmem:[#allocation5 + $0xa8] sm:$0xf]
        %v261 = vld [vmem:[#allocation5 + $0xac] sm:$0xf]
        %v262 = vld [vmem:[#allocation5 + $0xb0] sm:$0xf]
        %v263 = vld [vmem:[#allocation5 + $0xb4] sm:$0xf]
        %v264 = vld [vmem:[#allocation5 + $0xb8] sm:$0xf]
        %v265 = vld [vmem:[#allocation5 + $0xbc] sm:$0xf]
        %v266 = vld [vmem:[#allocation5 + $0xc0] sm:$0xf]
        %v267 = vld [vmem:[#allocation5 + $0xc4] sm:$0xf]
        %v268 = vld [vmem:[#allocation5 + $0xc8] sm:$0xf]
        %v269 = vld [vmem:[#allocation5 + $0xcc] sm:$0xf]
        %v270 = vld [vmem:[#allocation5 + $0xd0] sm:$0xf]
        %v271 = vld [vmem:[#allocation5 + $0xd4] sm:$0xf]
        %v272 = vld [vmem:[#allocation5 + $0xd8] sm:$0xf]
        %v273 = vld [vmem:[#allocation5 + $0xdc] sm:$0xf]
        %v274 = vld [vmem:[#allocation5 + $0xe0] sm:$0xf]
        %v275 = vld [vmem:[#allocation5 + $0xe4] sm:$0xf]
        %v276 = vld [vmem:[#allocation5 + $0xe8] sm:$0xf]
        %v277 = vld [vmem:[#allocation5 + $0xec] sm:$0xf]
        %v278 = vld [vmem:[#allocation5 + $0xf0] sm:$0xf]
        %v279 = vld [vmem:[#allocation5 + $0xf4] sm:$0xf]
        %v280 = vld [vmem:[#allocation5 + $0xf8] sm:$0xf]
        %v281 = vld [vmem:[#allocation5 + $0xfc] sm:$0xf]
        %v282 = vld [vmem:[#allocation5 + $0x100] sm:$0xf]
        %v283 = vld [vmem:[#allocation5 + $0x104] sm:$0xf]
        %v284 = vld [vmem:[#allocation5 + $0x108] sm:$0xf]
        %v285 = vld [vmem:[#allocation5 + $0x10c] sm:$0xf]
        %v286 = vld [vmem:[#allocation5 + $0x110] sm:$0xf]
        %v287 = vld [vmem:[#allocation5 + $0x114] sm:$0xf]
        %v288 = vld [vmem:[#allocation5 + $0x118] sm:$0xf]
        %v289 = vld [vmem:[#allocation5 + $0x11c] sm:$0xf]
        %v290 = vld [vmem:[#allocation5 + $0x120] sm:$0xf]
        %v291 = vld [vmem:[#allocation5 + $0x124] sm:$0xf]
        %v292 = vld [vmem:[#allocation5 + $0x128] sm:$0xf]
        %v293 = vld [vmem:[#allocation5 + $0x12c] sm:$0xf]
        %v294 = vld [vmem:[#allocation5 + $0x130] sm:$0xf]
        %v295 = vld [vmem:[#allocation5 + $0x134] sm:$0xf]
        %v296 = vld [vmem:[#allocation5 + $0x138] sm:$0xf]
        %v297 = vld [vmem:[#allocation5 + $0x13c] sm:$0xf]
        %v298 = vld [vmem:[#allocation5 + $0x140] sm:$0xf]
        %v299 = vld [vmem:[#allocation5 + $0x144] sm:$0xf]
        %v300 = vld [vmem:[#allocation5 + $0x148] sm:$0xf]
        %v301 = vld [vmem:[#allocation5 + $0x14c] sm:$0xf]
        %v302 = vld [vmem:[#allocation5 + $0x150] sm:$0xf]
        %v303 = vld [vmem:[#allocation5 + $0x154] sm:$0xf]
        %v304 = vld [vmem:[#allocation5 + $0x158] sm:$0xf]
        %v305 = vld [vmem:[#allocation5 + $0x15c] sm:$0xf]
        %v306 = vld [vmem:[#allocation5 + $0x160] sm:$0xf]
        %v307 = vld [vmem:[#allocation5 + $0x164] sm:$0xf]
        %v308 = vld [vmem:[#allocation5 + $0x168] sm:$0xf]
        %v309 = vld [vmem:[#allocation5 + $0x16c] sm:$0xf]
        %v310 = vld [vmem:[#allocation5 + $0x170] sm:$0xf]
        %v311 = vld [vmem:[#allocation5 + $0x174] sm:$0xf]
        %v312 = vld [vmem:[#allocation5 + $0x178] sm:$0xf]
        %v313 = vld [vmem:[#allocation5 + $0x17c] sm:$0xf]
        %v314 = vld [vmem:[%s2] sm:$0x1]
        %v316 = vperm.slane %v314, 0
        %v414 = vunpack.c.l.b16 %v218
        %v415 = vunpack.c.l.b16 %v219
        %v416 = vunpack.c.l.b16 %v220
        %v417 = vunpack.c.l.b16 %v221
        %v418 = vunpack.c.l.b16 %v222
        %v419 = vunpack.c.l.b16 %v223
        %v420 = vunpack.c.l.b16 %v224
        %v421 = vunpack.c.l.b16 %v225
        %v422 = vunpack.c.l.b16 %v226
        %v423 = vunpack.c.l.b16 %v227
        %v424 = vunpack.c.l.b16 %v228
        %v425 = vunpack.c.l.b16 %v229
        %v426 = vunpack.c.l.b16 %v230
        %v427 = vunpack.c.l.b16 %v231
        %v428 = vunpack.c.l.b16 %v232
        %v429 = vunpack.c.l.b16 %v233
        %v430 = vunpack.c.l.b16 %v234
        %v431 = vunpack.c.l.b16 %v235
        %v432 = vunpack.c.l.b16 %v236
        %v433 = vunpack.c.l.b16 %v237
        %v434 = vunpack.c.l.b16 %v238
        %v435 = vunpack.c.l.b16 %v239
        %v436 = vunpack.c.l.b16 %v240
        %v437 = vunpack.c.l.b16 %v241
        %v438 = vunpack.c.l.b16 %v242
        %v439 = vunpack.c.l.b16 %v243
        %v440 = vunpack.c.l.b16 %v244
        %v441 = vunpack.c.l.b16 %v245
        %v442 = vunpack.c.l.b16 %v246
        %v443 = vunpack.c.l.b16 %v247
        %v444 = vunpack.c.l.b16 %v248
        %v445 = vunpack.c.l.b16 %v249
        %v446 = vunpack.c.l.b16 %v250
        %v447 = vunpack.c.l.b16 %v251
        %v448 = vunpack.c.l.b16 %v252
        %v449 = vunpack.c.l.b16 %v253
        %v450 = vunpack.c.l.b16 %v254
        %v451 = vunpack.c.l.b16 %v255
        %v452 = vunpack.c.l.b16 %v256
        %v453 = vunpack.c.l.b16 %v257
        %v454 = vunpack.c.l.b16 %v258
        %v455 = vunpack.c.l.b16 %v259
        %v456 = vunpack.c.l.b16 %v260
        %v457 = vunpack.c.l.b16 %v261
        %v458 = vunpack.c.l.b16 %v262
        %v459 = vunpack.c.l.b16 %v263
        %v460 = vunpack.c.l.b16 %v264
        %v461 = vunpack.c.l.b16 %v265
        %v462 = vunpack.c.l.b16 %v266
        %v463 = vunpack.c.l.b16 %v267
        %v464 = vunpack.c.l.b16 %v268
        %v465 = vunpack.c.l.b16 %v269
        %v466 = vunpack.c.l.b16 %v270
        %v467 = vunpack.c.l.b16 %v271
        %v468 = vunpack.c.l.b16 %v272
        %v469 = vunpack.c.l.b16 %v273
        %v470 = vunpack.c.l.b16 %v274
        %v471 = vunpack.c.l.b16 %v275
        %v472 = vunpack.c.l.b16 %v276
        %v473 = vunpack.c.l.b16 %v277
        %v474 = vunpack.c.l.b16 %v278
        %v475 = vunpack.c.l.b16 %v279
        %v476 = vunpack.c.l.b16 %v280
        %v477 = vunpack.c.l.b16 %v281
        %v478 = vunpack.c.l.b16 %v282
        %v479 = vunpack.c.l.b16 %v283
        %v480 = vunpack.c.l.b16 %v284
        %v481 = vunpack.c.l.b16 %v285
        %v482 = vunpack.c.l.b16 %v286
        %v483 = vunpack.c.l.b16 %v287
        %v484 = vunpack.c.l.b16 %v288
        %v485 = vunpack.c.l.b16 %v289
        %v486 = vunpack.c.l.b16 %v290
        %v487 = vunpack.c.l.b16 %v291
        %v488 = vunpack.c.l.b16 %v292
        %v489 = vunpack.c.l.b16 %v293
        %v490 = vunpack.c.l.b16 %v294
        %v491 = vunpack.c.l.b16 %v295
        %v492 = vunpack.c.l.b16 %v296
        %v493 = vunpack.c.l.b16 %v297
        %v494 = vunpack.c.l.b16 %v298
        %v495 = vunpack.c.l.b16 %v299
        %v496 = vunpack.c.l.b16 %v300
        %v497 = vunpack.c.l.b16 %v301
        %v498 = vunpack.c.l.b16 %v302
        %v499 = vunpack.c.l.b16 %v303
        %v500 = vunpack.c.l.b16 %v304
        %v501 = vunpack.c.l.b16 %v305
        %v502 = vunpack.c.l.b16 %v306
        %v503 = vunpack.c.l.b16 %v307
        %v504 = vunpack.c.l.b16 %v308
        %v505 = vunpack.c.l.b16 %v309
        %v506 = vunpack.c.l.b16 %v310
        %v507 = vunpack.c.l.b16 %v311
        %v508 = vunpack.c.l.b16 %v312
        %v509 = vunpack.c.l.b16 %v313
        %v510 = vpack.c.b16 %v415, %v414
        %v511 = vpack.c.b16 %v417, %v416
        %v512 = vpack.c.b16 %v419, %v418
        %v513 = vpack.c.b16 %v421, %v420
        %v514 = vpack.c.b16 %v423, %v422
        %v515 = vpack.c.b16 %v425, %v424
        %v516 = vpack.c.b16 %v427, %v426
        %v517 = vpack.c.b16 %v429, %v428
        %v518 = vpack.c.b16 %v431, %v430
        %v519 = vpack.c.b16 %v433, %v432
        %v520 = vpack.c.b16 %v435, %v434
        %v521 = vpack.c.b16 %v437, %v436
        %v522 = vpack.c.b16 %v439, %v438
        %v523 = vpack.c.b16 %v441, %v440
        %v524 = vpack.c.b16 %v443, %v442
        %v525 = vpack.c.b16 %v445, %v444
        %v526 = vpack.c.b16 %v447, %v446
        %v527 = vpack.c.b16 %v449, %v448
        %v528 = vpack.c.b16 %v451, %v450
        %v529 = vpack.c.b16 %v453, %v452
        %v530 = vpack.c.b16 %v455, %v454
        %v531 = vpack.c.b16 %v457, %v456
        %v532 = vpack.c.b16 %v459, %v458
        %v533 = vpack.c.b16 %v461, %v460
        %v534 = vpack.c.b16 %v463, %v462
        %v535 = vpack.c.b16 %v465, %v464
        %v536 = vpack.c.b16 %v467, %v466
        %v537 = vpack.c.b16 %v469, %v468
        %v538 = vpack.c.b16 %v471, %v470
        %v539 = vpack.c.b16 %v473, %v472
        %v540 = vpack.c.b16 %v475, %v474
        %v541 = vpack.c.b16 %v477, %v476
        %v542 = vpack.c.b16 %v479, %v478
        %v543 = vpack.c.b16 %v481, %v480
        %v544 = vpack.c.b16 %v483, %v482
        %v545 = vpack.c.b16 %v485, %v484
        %v546 = vpack.c.b16 %v487, %v486
        %v547 = vpack.c.b16 %v489, %v488
        %v548 = vpack.c.b16 %v491, %v490
        %v549 = vpack.c.b16 %v493, %v492
        %v550 = vpack.c.b16 %v495, %v494
        %v551 = vpack.c.b16 %v497, %v496
        %v552 = vpack.c.b16 %v499, %v498
        %v553 = vpack.c.b16 %v501, %v500
        %v554 = vpack.c.b16 %v503, %v502
        %v555 = vpack.c.b16 %v505, %v504
        %v556 = vpack.c.b16 %v507, %v506
        %v557 = vpack.c.b16 %v509, %v508
        %606 = vmatpush.bf16.msra.mxu0 %v517
        %607 = vmatpush.bf16.msra.mxu0 %v516
        %608 = vmatpush.bf16.msra.mxu0 %v515
        %609 = vmatpush.bf16.msra.mxu0 %v514
        %610 = vmatpush.bf16.msra.mxu0 %v513
        %611 = vmatpush.bf16.msra.mxu0 %v512
        %612 = vmatpush.bf16.msra.mxu0 %v511
        %613 = vmatpush.bf16.msra.mxu0 %v510
        %614 = vmatmul.bf16.gmra.mxu0 %v212
        %v615 = vpop.f32.mrf.mxu0
        %v616 = vadd.f32 %v316, %v615
        %v617 = vpop.f32.mrf.mxu0
        %618 = vdwg.mxu0
        %619 = vmatpush.bf16.msra.mxu0 %v525
        %620 = vmatpush.bf16.msra.mxu0 %v524
        %621 = vmatpush.bf16.msra.mxu0 %v523
        %622 = vmatpush.bf16.msra.mxu0 %v522
        %623 = vmatpush.bf16.msra.mxu0 %v521
        %624 = vmatpush.bf16.msra.mxu0 %v520
        %625 = vmatpush.bf16.msra.mxu0 %v519
        %626 = vmatpush.bf16.msra.mxu0 %v518
        %627 = vmatmul.bf16.gmra.mxu0 %v213
        %v628 = vpop.f32.mrf.mxu0
        %v629 = vadd.f32 %v616, %v628
        %v630 = vpop.f32.mrf.mxu0
        %631 = vdwg.mxu0
        %632 = vmatpush.bf16.msra.mxu0 %v533
        %633 = vmatpush.bf16.msra.mxu0 %v532
        %634 = vmatpush.bf16.msra.mxu0 %v531
        %635 = vmatpush.bf16.msra.mxu0 %v530
        %636 = vmatpush.bf16.msra.mxu0 %v529
        %637 = vmatpush.bf16.msra.mxu0 %v528
        %638 = vmatpush.bf16.msra.mxu0 %v527
        %639 = vmatpush.bf16.msra.mxu0 %v526
        %640 = vmatmul.bf16.gmra.mxu0 %v214
        %v641 = vpop.f32.mrf.mxu0
        %v642 = vadd.f32 %v629, %v641
        %v643 = vpop.f32.mrf.mxu0
        %644 = vdwg.mxu0
        %645 = vmatpush.bf16.msra.mxu0 %v541
        %646 = vmatpush.bf16.msra.mxu0 %v540
        %647 = vmatpush.bf16.msra.mxu0 %v539
        %648 = vmatpush.bf16.msra.mxu0 %v538
        %649 = vmatpush.bf16.msra.mxu0 %v537
        %650 = vmatpush.bf16.msra.mxu0 %v536
        %651 = vmatpush.bf16.msra.mxu0 %v535
        %652 = vmatpush.bf16.msra.mxu0 %v534
        %653 = vmatmul.bf16.gmra.mxu0 %v215
        %v654 = vpop.f32.mrf.mxu0
        %v655 = vadd.f32 %v642, %v654
        %v656 = vpop.f32.mrf.mxu0
        %657 = vdwg.mxu0
        %658 = vmatpush.bf16.msra.mxu0 %v549
        %659 = vmatpush.bf16.msra.mxu0 %v548
        %660 = vmatpush.bf16.msra.mxu0 %v547
        %661 = vmatpush.bf16.msra.mxu0 %v546
        %662 = vmatpush.bf16.msra.mxu0 %v545
        %663 = vmatpush.bf16.msra.mxu0 %v544
        %664 = vmatpush.bf16.msra.mxu0 %v543
        %665 = vmatpush.bf16.msra.mxu0 %v542
        %666 = vmatmul.bf16.gmra.mxu0 %v216
        %v667 = vpop.f32.mrf.mxu0
        %v668 = vadd.f32 %v655, %v667
        %v669 = vpop.f32.mrf.mxu0
        %670 = vdwg.mxu0
        %671 = vmatpush.bf16.msra.mxu0 %v557
        %672 = vmatpush.bf16.msra.mxu0 %v556
        %673 = vmatpush.bf16.msra.mxu0 %v555
        %674 = vmatpush.bf16.msra.mxu0 %v554
        %675 = vmatpush.bf16.msra.mxu0 %v553
        %676 = vmatpush.bf16.msra.mxu0 %v552
        %677 = vmatpush.bf16.msra.mxu0 %v551
        %678 = vmatpush.bf16.msra.mxu0 %v550
        %679 = vmatmul.bf16.gmra.mxu0 %v217
        %v680 = vpop.f32.mrf.mxu0
        %v681 = vadd.f32 %v668, %v680
        %v682 = vpop.f32.mrf.mxu0
        %683 = vdwg.mxu0
        %684 = vmax.xlane.f32.xlu0 %v681
        %v685 = vpop.xlane.xlu0 %684
        %v686 = vsub.f32 %v681, %v685
        %v687 = vmul.f32 %v686, 1.442695
        %v688 = vpow.pop %v687
        %689 = vadd.xlane.f32.xlu0 %v688
        %v690 = vpop.xlane.xlu0 %689
        %v691 = vrcp.pop %v690
        %v692 = vmul.f32 %v690, %v691
        %v693 = vsub.f32 1.0, %v692
        %v694 = vmul.f32 %v691, %v693
        %v695 = vadd.f32 %v691, %v694
        %vm696 = vweird.f32 %v690
        %vm697 = vweird.f32 %v691
        %vm698 = vmor %vm696, %vm697
        %v699 = vsel %vm698, %v691, %v695
        %v700 = vand.u32 2147483647, %v690
        %vm701 = vcmp.eq.f32.partialorder %v700, 8.507059e+37
        %v702 = vand.u32 %v690, 2147483648
        %v703 = vor.u32 1.1754944e-38, %v702
        %v704 = vsel %vm701, %v703, %v699
        %v705 = vmul.f32 %v688, %v704
        %706 = vst [vmem:[%s205] sm:$0xff] %v705
        %s707 = sand.u32 %s97, 1
        %s708 = scalar_lea.sflag [#allocation4], %s707
        %s709 = sand.u32 %s97, 1
        %s710 = smul.addr %s709, 8
        %s711 = scalar_lea.vmem [#allocation7], %s710
        // Predicated region
        $region41: #{tpu_custom_call.1} parent=31 // pred_check
          %p712 = pneg %p107
        $region42: #{tpu_custom_call.1} parent=31 // pred_check_branch
          %714 = sbr.rel (%p712) target = $region44
        $region43: #{tpu_custom_call.1} parent=31 // pred_region
          %716 = vsyncadd %s708, 0
          %s717 = smul.addr %s21, 8
          %s718 = scalar_lea.hbm %s3, %s717
          %s720 = sshll.u32 %s711, 4
          %s721 = int_to_ptr.vmem [resolvable:$true] %s720
          %s722 = sshll.u32 %s718, 4
          %s723 = int_to_ptr.hbm [resolvable:$true] %s722
          %725 = dma.vmem_to_hbm [thread:$0]  %s721, 128, %s723, %s708
        $region44: #{tpu_custom_call.1} parent=31 // pred_fallthru
          _
      $region32: #{tpu_custom_call.1} parent=5 // pred_fallthru
        _
      %p726 = scmp.le.s32.totalorder 2, %s16
      // Predicated region
      $region45: #{tpu_custom_call.1} parent=5 // pred_check
        %p727 = pneg %p726
      $region46: #{tpu_custom_call.1} parent=5 // pred_check_branch
        %729 = sbr.rel (%p727) target = $region48
      $region47: #{tpu_custom_call.1} parent=5 // pred_region
        %s730 = ssub.s32 %s16, 2
        // Predicated region
        $region49: #{tpu_custom_call.1} parent=47 // pred_check
          %p731 = pneg %p113
        $region50: #{tpu_custom_call.1} parent=47 // pred_check_branch
          %733 = sbr.rel (%p731) target = $region52
        $region51: #{tpu_custom_call.1} parent=47 // pred_region
          %s734 = sand.u32 %s98, 1
          %s735 = scalar_lea.sflag [#allocation4], %s734
          %s736 = sand.u32 %s98, 1
          %s737 = smul.addr %s736, 8
          %s738 = scalar_lea.vmem [#allocation7], %s737
          %740 = dma.done %s735, 128
        $region52: #{tpu_custom_call.1} parent=47 // pred_fallthru
          _
      $region48: #{tpu_custom_call.1} parent=5 // pred_fallthru
        _
    $region6: #{tpu_custom_call.1} parent=1 // loop_footer
      %s20 = sadd.s32 1, %s16
    $region7: #{tpu_custom_call.1} parent=1 // loop_footer_branch
      %15 = sbr.rel target = $region3
    $region8: #{tpu_custom_call.1} parent=1 // loop_exit
      _
    %741 = vsyncpa [#allocation3], 1
    %s742 = scalar_lea.sflag [#allocation3], 1
    %743 = vsyncpa %s742, 1
    %744 = vsyncpa [#allocation6], 1
    %745 = vsyncpa [#allocation4], 1
    %s746 = scalar_lea.sflag [#allocation4], 1
    %747 = vsyncpa %s746, 1

</llo_original>
